<compile_context>
chip_gen: v6e
topology: v6e:2x2x1
jax: 0.10.0
libtpu: 0.0.40
codegen_flags: <defaults>
</compile_context>

<pallas_src>
import functools

import jax
import jax.numpy as jnp
from jax.experimental import pallas as pl
from jax.experimental.pallas import tpu as pltpu


def _classifier_kernel(x_ref, w1_ref, b1_ref, w2_ref, b2_ref, out_ref):
    """Fused MLP forward on one batch tile: out = tanh(x @ W1 + b1) @ W2 + b2.

    x_ref:  (TB, D)   f32  (cast to matmul dtype in-VMEM)
    w1_ref: (D,  Hp)  bf16 (or f32)   resident
    b1_ref: (1,  Hp)  f32             resident
    w2_ref: (Hp, Cp)  bf16 (or f32)   resident
    b2_ref: (1,  Cp)  f32             resident
    out_ref:(TB, Cp)  f32  (lane-dense: Cp is a multiple of 128)
    """
    # In-VMEM cast of the activation tile (free on the VPU; avoids a wrapper
    # pass and halves nothing in HBM since x is streamed once either way).
    x = x_ref[...].astype(w1_ref.dtype)
    # fc1 on the MXU, f32 accumulation.
    h = jnp.dot(x, w1_ref[...], preferred_element_type=jnp.float32)
    # Bias + tanh in f32 (also lowers cleanly on v5e, which lacks bf16 VPU/EUP).
    h = jnp.tanh(h + b1_ref[...])
    # fc2 on the MXU, f32 accumulation.
    o = jnp.dot(h.astype(w2_ref.dtype), w2_ref[...],
                preferred_element_type=jnp.float32)
    out_ref[...] = (o + b2_ref[...]).astype(out_ref.dtype)


def _round_up(x, m):
    return (x + m - 1) // m * m


def prepare_classifier_params(w1, b1, w2, b2, *, matmul_dtype=jnp.bfloat16):
    """One-time weight prep (pad hidden/class dims to lane width, cast for MXU).

    w1: (input_size, hidden)      b1: (1, hidden) or (hidden,)
    w2: (hidden, num_classes)     b2: (1, num_classes) or (num_classes,)
    Returns (w1p, b1p, w2p, b2p, num_classes).  Do this at init, not per call.
    """
    D, H = w1.shape
    C = w2.shape[1]
    Hp = _round_up(H, 128)
    Cp = _round_up(C, 128)
    f32 = jnp.float32
    # Padded hidden units see tanh(0 + 0) = 0 and multiply zero W2 rows, so
    # they contribute exactly zero; padded output columns are sliced off by
    # the consumer.
    w1p = jnp.pad(w1.astype(f32), ((0, 0), (0, Hp - H))).astype(matmul_dtype)
    b1p = jnp.pad(b1.astype(f32).reshape(1, H), ((0, 0), (0, Hp - H)))
    w2p = jnp.pad(w2.astype(f32), ((0, Hp - H), (0, Cp - C))).astype(matmul_dtype)
    b2p = jnp.pad(b2.astype(f32).reshape(1, C), ((0, 0), (0, Cp - C)))
    return w1p, b1p, w2p, b2p, C


def classifier_forward(x, w1p, b1p, w2p, b2p, num_classes, *,
                       batch_tile=512, vmem_limit_bytes=None):
    """Pallas forward.  x: (B, input_size) f32 -> (B, num_classes) f32."""
    B, D = x.shape
    Hp = w1p.shape[1]
    Cp = w2p.shape[1]

    # Batch tile selection:
    #  * B <= batch_tile: one tile covering the whole batch (block dims equal
    #    the full array dims -> satisfies the (8,128) rule with zero padding).
    #  * B  > batch_tile: 256-aligned tile (full MXU height on v6e/v7x, and a
    #    multiple of 8 sublanes).  cdiv grid -> partial last tile is handled
    #    by Pallas (masked writeback), so x/out are never padded in HBM.
    if B <= batch_tile:
        TB = B
    else:
        TB = _round_up(max(batch_tile, 256), 256)

    grid = (pl.cdiv(B, TB),)

    out_padded = pl.pallas_call(
        _classifier_kernel,
        out_shape=jax.ShapeDtypeStruct((B, Cp), jnp.float32),
        grid=grid,
        in_specs=[
            pl.BlockSpec((TB, D), lambda i: (i, 0)),    # x: tiled over batch
            pl.BlockSpec((D, Hp), lambda i: (0, 0)),    # W1: VMEM-resident
            pl.BlockSpec((1, Hp), lambda i: (0, 0)),    # b1: resident
            pl.BlockSpec((Hp, Cp), lambda i: (0, 0)),   # W2: resident
            pl.BlockSpec((1, Cp), lambda i: (0, 0)),    # b2: resident
        ],
        out_specs=pl.BlockSpec((TB, Cp), lambda i: (i, 0)),
        compiler_params=pltpu.CompilerParams(
            dimension_semantics=("parallel",),          # megacore on v7x (needs >=2 tiles)
            vmem_limit_bytes=vmem_limit_bytes,
        ),
    )(x, w1p, b1p, w2p, b2p)

    # Lane-padded class columns are dropped here; under jit this slice fuses
    # into the consumer.
    return out_padded[:, :num_classes]


def init_params(key, input_size, hidden_size, num_classes, dtype=jnp.float32):
    """Deterministic synthetic parameter init (shapes match nn.Linear, transposed)."""
    k1, k2, k3, k4 = jax.random.split(key, 4)
    w1 = jax.random.normal(k1, (input_size, hidden_size), dtype) * (1.0 / jnp.sqrt(input_size))
    b1 = jax.random.normal(k2, (1, hidden_size), dtype) * 0.01
    w2 = jax.random.normal(k3, (hidden_size, num_classes), dtype) * (1.0 / jnp.sqrt(hidden_size))
    b2 = jax.random.normal(k4, (1, num_classes), dtype) * 0.01
    return w1, b1, w2, b2


if __name__ == "__main__":
    # Small shapes consistent with the module's forward (x: [batch, input_size]).
    batch = 2
    input_size = 32        # "input_size" ctor arg
    hidden_size1 = 64      # args.hidden_size1
    num_classes = 10       # "num_classes" ctor arg

    key = jax.random.PRNGKey(0)
    kx, kp = jax.random.split(key)

    x = jax.random.normal(kx, (batch, input_size), jnp.float32)
    w1, b1, w2, b2 = init_params(kp, input_size, hidden_size1, num_classes)

    # One-time weight prep (hoisted out of the per-call path).
    w1p, b1p, w2p, b2p, n_cls = prepare_classifier_params(w1, b1, w2, b2)

    fwd = jax.jit(functools.partial(classifier_forward, num_classes=n_cls))
    out = fwd(x, w1p, b1p, w2p, b2p)
    out = jax.block_until_ready(out)

    # Pure-JAX reference applying the SAME bf16 casts the kernel uses
    # (bf16 MXU inputs, f32 accumulation, f32 tanh/bias epilogue).
    f32 = jnp.float32
    xb = x.astype(jnp.bfloat16).astype(f32)
    w1b = w1.astype(jnp.bfloat16).astype(f32)
    w2b = w2.astype(jnp.bfloat16).astype(f32)
    h_ref = jnp.tanh(xb @ w1b + b1)
    ref = h_ref.astype(jnp.bfloat16).astype(f32) @ w2b + b2

    assert out.shape == (batch, num_classes)
    assert jnp.allclose(out, ref, atol=2e-3, rtol=2e-3), "mismatch vs reference"

    print("KERNEL_OK")
</pallas_src>

<mosaic_0001>
module attributes {stable_mosaic.version = 11 : i64} {
  func.func @_classifier_kernel(%arg0: i32, %arg1: memref<2x32xf32, #tpu.memory_space<vmem>>, %arg2: memref<32x128xbf16, #tpu.memory_space<vmem>>, %arg3: memref<1x128xf32, #tpu.memory_space<vmem>>, %arg4: memref<128x128xbf16, #tpu.memory_space<vmem>>, %arg5: memref<1x128xf32, #tpu.memory_space<vmem>>, %arg6: memref<2x128xf32, #tpu.memory_space<vmem>>) attributes {dimension_semantics = [#tpu.dimension_semantics<parallel>], iteration_bounds = array<i64: 1>, scalar_prefetch = 0 : i64, scratch_operands = 0 : i64, tpu.core_type = #tpu.core_type<tc>, window_params = [{transform_indices = @transform_0, window_bounds = array<i64: 2, 32>}, {pipeline_mode = #tpu.pipeline_mode<synchronous>, transform_indices = @transform_1, window_bounds = array<i64: 32, 128>}, {pipeline_mode = #tpu.pipeline_mode<synchronous>, transform_indices = @transform_2, window_bounds = array<i64: 1, 128>}, {pipeline_mode = #tpu.pipeline_mode<synchronous>, transform_indices = @transform_3, window_bounds = array<i64: 128, 128>}, {pipeline_mode = #tpu.pipeline_mode<synchronous>, transform_indices = @transform_4, window_bounds = array<i64: 1, 128>}, {transform_indices = @transform_5, window_bounds = array<i64: 2, 128>}]} {
    %c0 = arith.constant 0 : index
    %c0_0 = arith.constant 0 : index
    %0 = vector.load %arg1[%c0, %c0_0] : memref<2x32xf32, #tpu.memory_space<vmem>>, vector<2x32xf32>
    %1 = arith.truncf %0 : vector<2x32xf32> to vector<2x32xbf16>
    %c0_1 = arith.constant 0 : index
    %c0_2 = arith.constant 0 : index
    %2 = vector.load %arg2[%c0_1, %c0_2] : memref<32x128xbf16, #tpu.memory_space<vmem>>, vector<32x128xbf16>
    %cst = arith.constant dense<0.000000e+00> : vector<2x128xf32>
    %3 = tpu.matmul %1, %2, %cst {dimension_numbers = #tpu.dot_dimension_numbers<[1], [0], [0], [1], [0, 0, 1, 1], [], []>} : vector<2x32xbf16>, vector<32x128xbf16>, vector<2x128xf32> -> vector<2x128xf32>
    %c0_3 = arith.constant 0 : index
    %c0_4 = arith.constant 0 : index
    %4 = vector.load %arg3[%c0_3, %c0_4] : memref<1x128xf32, #tpu.memory_space<vmem>>, vector<1x128xf32>
    %5 = vector.broadcast %4 : vector<1x128xf32> to vector<2x128xf32>
    %6 = arith.addf %3, %5 : vector<2x128xf32>
    %7 = math.tanh %6 : vector<2x128xf32>
    %8 = arith.truncf %7 : vector<2x128xf32> to vector<2x128xbf16>
    %c0_5 = arith.constant 0 : index
    %c0_6 = arith.constant 0 : index
    %9 = vector.load %arg4[%c0_5, %c0_6] : memref<128x128xbf16, #tpu.memory_space<vmem>>, vector<128x128xbf16>
    %cst_7 = arith.constant dense<0.000000e+00> : vector<2x128xf32>
    %10 = tpu.matmul %8, %9, %cst_7 {dimension_numbers = #tpu.dot_dimension_numbers<[1], [0], [0], [1], [0, 0, 1, 1], [], []>} : vector<2x128xbf16>, vector<128x128xbf16>, vector<2x128xf32> -> vector<2x128xf32>
    %c0_8 = arith.constant 0 : index
    %c0_9 = arith.constant 0 : index
    %11 = vector.load %arg5[%c0_8, %c0_9] : memref<1x128xf32, #tpu.memory_space<vmem>>, vector<1x128xf32>
    %12 = vector.broadcast %11 : vector<1x128xf32> to vector<2x128xf32>
    %13 = arith.addf %10, %12 : vector<2x128xf32>
    %c0_10 = arith.constant 0 : index
    %c0_11 = arith.constant 0 : index
    %14 = vector.load %arg6[%c0_10, %c0_11] : memref<2x128xf32, #tpu.memory_space<vmem>>, vector<2x128xf32>
    tpu.vector_store %arg6[%c0_10, %c0_11], %13 {strides = array<i32>} : memref<2x128xf32, #tpu.memory_space<vmem>>, vector<2x128xf32>,
    return
  }
  func.func @transform_0(%arg0: i32) -> (i32, i32) {
    %c0_i32 = arith.constant 0 : i32
    %c0_i32_0 = arith.constant 0 : i32
    return %arg0, %c0_i32 : i32, i32
  }
  func.func @transform_1(%arg0: i32) -> (i32, i32) {
    %c0_i32 = arith.constant 0 : i32
    %c0_i32_0 = arith.constant 0 : i32
    %c0_i32_1 = arith.constant 0 : i32
    return %c0_i32, %c0_i32_0 : i32, i32
  }
  func.func @transform_2(%arg0: i32) -> (i32, i32) {
    %c0_i32 = arith.constant 0 : i32
    %c0_i32_0 = arith.constant 0 : i32
    %c0_i32_1 = arith.constant 0 : i32
    return %c0_i32, %c0_i32_0 : i32, i32
  }
  func.func @transform_3(%arg0: i32) -> (i32, i32) {
    %c0_i32 = arith.constant 0 : i32
    %c0_i32_0 = arith.constant 0 : i32
    %c0_i32_1 = arith.constant 0 : i32
    return %c0_i32, %c0_i32_0 : i32, i32
  }
  func.func @transform_4(%arg0: i32) -> (i32, i32) {
    %c0_i32 = arith.constant 0 : i32
    %c0_i32_0 = arith.constant 0 : i32
    %c0_i32_1 = arith.constant 0 : i32
    return %c0_i32, %c0_i32_0 : i32, i32
  }
  func.func @transform_5(%arg0: i32) -> (i32, i32) {
    %c0_i32 = arith.constant 0 : i32
    %c0_i32_0 = arith.constant 0 : i32
    return %arg0, %c0_i32 : i32, i32
  }
}

</mosaic_0001>

<llo_original>
// kernel: classifier_forward.1
$region0: #{classifier_forward.1}
  #allocation0 [shape = 'u32[]', space=smem, size = 0x4, offset = 0x4, fixed_abs, tag = 'smem constant byte address 0x4 - core index']
  #allocation1 [shape = 'u32[144,128]{1,0:T(1,128)}', space=vmem, size = 0x12000, scoped, tag = 'internal scratch']
  %s0 = inlined_call_operand.hbm [shape: f32[2,32], index: 0, kind: input, shape index: {}]
  %s1 = inlined_call_operand.hbm [shape: bf16[32,128], index: 1, kind: input, shape index: {}]
  %s2 = inlined_call_operand.vmem [shape: f32[1,128], index: 2, kind: input, shape index: {}]
  %s3 = inlined_call_operand.hbm [shape: bf16[128,128], index: 3, kind: input, shape index: {}]
  %s4 = inlined_call_operand.vmem [shape: f32[1,128], index: 4, kind: input, shape index: {}]
  %s5 = inlined_call_operand.hbm [shape: f32[2,128], index: 5, kind: output, shape index: {}]
  %s6 = sld [smem:[#allocation0]]
  $region42: #{classifier_forward.1} parent=0
    _
  %s8 = ssub.s32 1, %s6
  %s9 = scalar_select 0, %s8, %s6
  $region1: #{classifier_forward.1} parent=0
    #allocation2 [shape = 'u8[1024]{0}', space=vmem, size = 0x400, scoped, tag = 'input window, operand 0, single buffered']
    #allocation3 [shape = 's32[1]{0}', space=sflag, size = 0x4, scoped, tag = 'scoped memory for classifier_forward.1']
    #allocation4 [shape = 's32[1]{0}', space=sflag, size = 0x4, scoped, tag = 'scoped memory for classifier_forward.1']
    #allocation5 [shape = 'u8[8192]{0}', space=vmem, size = 0x2000, scoped, tag = 'input window, operand 1, single buffered']
    #allocation6 [shape = 's32[1]{0}', space=sflag, size = 0x4, scoped, tag = 'scoped memory for classifier_forward.1']
    #allocation7 [shape = 'u8[32768]{0}', space=vmem, size = 0x8000, scoped, tag = 'input window, operand 3, single buffered']
    #allocation8 [shape = 'u8[1024]{0}', space=vmem, size = 0x400, scoped, tag = 'output window, operand 0, single buffered']
    %10 = vsyncpa [#allocation3], 0
    %11 = vsyncpa [#allocation6], 0
    %12 = vsyncpa [#allocation4], 0
    // Predicated region
    $region2: #{classifier_forward.1} parent=1 // pred_check
      _
    $region3: #{classifier_forward.1} parent=1 // pred_check_branch
      %14 = sbr.rel (0) target = $region5
    $region4: #{classifier_forward.1} parent=1 // pred_region
      %s16 = ssub.s32 32, 32
      %17 = vsyncadd [#allocation3], %s16
      %s19 = sshll.u32 [#allocation2], 4
      %s20 = int_to_ptr.vmem [resolvable:$true] %s19
      %22 = dma.hbm_to_vmem [thread:$0]  %s0, 32, %s20, [#allocation3]
    $region5: #{classifier_forward.1} parent=1 // pred_fallthru
      _
    // Predicated region
    $region6: #{classifier_forward.1} parent=1 // pred_check
      _
    $region7: #{classifier_forward.1} parent=1 // pred_check_branch
      %24 = sbr.rel (0) target = $region9
    $region8: #{classifier_forward.1} parent=1 // pred_region
      %s26 = ssub.s32 256, 256
      %27 = vsyncadd [#allocation6], %s26
      %s28 = sshll.u32 [#allocation5], 4
      %s29 = int_to_ptr.vmem [resolvable:$true] %s28
      %34 = dma.hbm_to_vmem [thread:$0]  %s1, 256, %s29, [#allocation6], 64, 64, 4
    $region9: #{classifier_forward.1} parent=1 // pred_fallthru
      _
    // Predicated region
    $region10: #{classifier_forward.1} parent=1 // pred_check
      _
    $region11: #{classifier_forward.1} parent=1 // pred_check_branch
      %36 = sbr.rel (0) target = $region13
    $region12: #{classifier_forward.1} parent=1 // pred_region
      _
    $region13: #{classifier_forward.1} parent=1 // pred_fallthru
      _
    // Predicated region
    $region14: #{classifier_forward.1} parent=1 // pred_check
      _
    $region15: #{classifier_forward.1} parent=1 // pred_check_branch
      %38 = sbr.rel (0) target = $region17
    $region16: #{classifier_forward.1} parent=1 // pred_region
      %s40 = ssub.s32 1024, 1024
      %41 = vsyncadd [#allocation6], %s40
      %s42 = sshll.u32 [#allocation7], 4
      %s43 = int_to_ptr.vmem [resolvable:$true] %s42
      %48 = dma.hbm_to_vmem [thread:$0]  %s3, 1024, %s43, [#allocation6], 64, 64, 4
    $region17: #{classifier_forward.1} parent=1 // pred_fallthru
      _
    // Predicated region
    $region18: #{classifier_forward.1} parent=1 // pred_check
      _
    $region19: #{classifier_forward.1} parent=1 // pred_check_branch
      %50 = sbr.rel (0) target = $region21
    $region20: #{classifier_forward.1} parent=1 // pred_region
      _
    $region21: #{classifier_forward.1} parent=1 // pred_fallthru
      _
    // Predicated region
    $region22: #{classifier_forward.1} parent=1 // pred_check
      _
    $region23: #{classifier_forward.1} parent=1 // pred_check_branch
      %52 = sbr.rel (0) target = $region25
    $region24: #{classifier_forward.1} parent=1 // pred_region
      %53 = dma.done [#allocation3], 32
    $region25: #{classifier_forward.1} parent=1 // pred_fallthru
      _
    // Predicated region
    $region26: #{classifier_forward.1} parent=1 // pred_check
      _
    $region27: #{classifier_forward.1} parent=1 // pred_check_branch
      %55 = sbr.rel (0) target = $region29
    $region28: #{classifier_forward.1} parent=1 // pred_region
      %56 = dma.done [#allocation6], 256
    $region29: #{classifier_forward.1} parent=1 // pred_fallthru
      _
    // Predicated region
    $region30: #{classifier_forward.1} parent=1 // pred_check
      _
    $region31: #{classifier_forward.1} parent=1 // pred_check_branch
      %58 = sbr.rel (0) target = $region33
    $region32: #{classifier_forward.1} parent=1 // pred_region
      %59 = dma.done [#allocation6], 1024
    $region33: #{classifier_forward.1} parent=1 // pred_fallthru
      _
    %v61 = vld [vmem:[#allocation2] sm:$0x3]
    %v62 = vpack.c.bf16 %v61, %v61
    %v63 = vld [vmem:[#allocation5] sm:$0xf]
    %v64 = vld [vmem:[#allocation5 + $0x4] sm:$0xf]
    %v65 = vld [vmem:[#allocation5 + $0x8] sm:$0xf]
    %v66 = vld [vmem:[#allocation5 + $0xc] sm:$0xf]
    %v67 = vld [vmem:[%s2] sm:$0x1]
    %v69 = vlaneseq
    %v70 = vshrl.u32 %v69, 7
    %v71 = vsub.s32 0, %v70
    %v72 = vrot.slane %v67, %v71
    %v78 = vunpack.c.l.b16 %v63
    %v79 = vunpack.c.l.b16 %v64
    %v80 = vunpack.c.l.b16 %v65
    %v81 = vunpack.c.l.b16 %v66
    %v82 = vpack.c.b16 %v79, %v78
    %v83 = vpack.c.b16 %v81, %v80
    %vm86 = vcmask 261120
    %v88 = vsel %vm86, %v62, 0
    %90 = vmatprep.subr.bf16.mxu0 0
    %91 = vmatpush1.bf16.msra.mxu0 0
    %92 = vmatprep.subr.bf16.mxu0 0
    %93 = vmatpush1.bf16.msra.mxu0 0
    %94 = vmatprep.subr.bf16.mxu0 0
    %95 = vmatpush1.bf16.msra.mxu0 0
    %96 = vmatprep.subr.bf16.mxu0 0
    %97 = vmatpush1.bf16.msra.mxu0 0
    %98 = vmatprep.subr.bf16.mxu0 0
    %99 = vmatpush1.bf16.msra.mxu0 0
    %100 = vmatprep.subr.bf16.mxu0 0
    %101 = vmatpush1.bf16.msra.mxu0 0
    %102 = vmatprep.subr.bf16.mxu0 0
    %103 = vmatpush1.bf16.msra.mxu0 %v83
    %104 = vmatprep.subr.bf16.mxu0 0
    %105 = vmatpush1.bf16.msra.mxu0 %v82
    %106 = vmatprep.subr.bf16.mxu0 0
    %107 = vmatpush2.bf16.msra.mxu0 0
    %108 = vmatprep.subr.bf16.mxu0 0
    %109 = vmatpush2.bf16.msra.mxu0 0
    %110 = vmatprep.subr.bf16.mxu0 0
    %111 = vmatpush2.bf16.msra.mxu0 0
    %112 = vmatprep.subr.bf16.mxu0 0
    %113 = vmatpush2.bf16.msra.mxu0 0
    %114 = vmatprep.subr.bf16.mxu0 0
    %115 = vmatpush2.bf16.msra.mxu0 0
    %116 = vmatprep.subr.bf16.mxu0 0
    %117 = vmatpush2.bf16.msra.mxu0 0
    %118 = vmatprep.subr.bf16.mxu0 0
    %119 = vmatpush2.bf16.msra.mxu0 0
    %120 = vmatprep.subr.bf16.mxu0 0
    %121 = vmatpush2.bf16.msra.mxu0 0
    %122 = vmatprep.mubr.bf16.mxu0 0
    %123 = vmatmul.mubr.bf16.gmra.mxu0 %v88
    %v124 = vpop.f32.mrf.mxu0
    %v125 = vadd.f32 %v72, %v124
    %v126 = vpop.f32.mrf.mxu0
    %v127 = vpop.f32.mrf.mxu0
    %v128 = vpop.f32.mrf.mxu0
    %129 = vdwg.mxu0
    %v130 = vtanh.pop %v125
    %v131 = vpack.c.bf16 %v130, %v130
    %v132 = vld [vmem:[#allocation7] sm:$0xf]
    %v133 = vld [vmem:[#allocation7 + $0x4] sm:$0xf]
    %v134 = vld [vmem:[#allocation7 + $0x8] sm:$0xf]
    %v135 = vld [vmem:[#allocation7 + $0xc] sm:$0xf]
    %v136 = vld [vmem:[#allocation7 + $0x10] sm:$0xf]
    %v137 = vld [vmem:[#allocation7 + $0x14] sm:$0xf]
    %v138 = vld [vmem:[#allocation7 + $0x18] sm:$0xf]
    %v139 = vld [vmem:[#allocation7 + $0x1c] sm:$0xf]
    %v140 = vld [vmem:[#allocation7 + $0x20] sm:$0xf]
    %v141 = vld [vmem:[#allocation7 + $0x24] sm:$0xf]
    %v142 = vld [vmem:[#allocation7 + $0x28] sm:$0xf]
    %v143 = vld [vmem:[#allocation7 + $0x2c] sm:$0xf]
    %v144 = vld [vmem:[#allocation7 + $0x30] sm:$0xf]
    %v145 = vld [vmem:[#allocation7 + $0x34] sm:$0xf]
    %v146 = vld [vmem:[#allocation7 + $0x38] sm:$0xf]
    %v147 = vld [vmem:[#allocation7 + $0x3c] sm:$0xf]
    %v148 = vld [vmem:[%s4] sm:$0x1]
    %v150 = vlaneseq
    %v151 = vshrl.u32 %v150, 7
    %v152 = vsub.s32 0, %v151
    %v153 = vrot.slane %v148, %v152
    %v171 = vunpack.c.l.b16 %v132
    %v172 = vunpack.c.l.b16 %v133
    %v173 = vunpack.c.l.b16 %v134
    %v174 = vunpack.c.l.b16 %v135
    %v175 = vunpack.c.l.b16 %v136
    %v176 = vunpack.c.l.b16 %v137
    %v177 = vunpack.c.l.b16 %v138
    %v178 = vunpack.c.l.b16 %v139
    %v179 = vunpack.c.l.b16 %v140
    %v180 = vunpack.c.l.b16 %v141
    %v181 = vunpack.c.l.b16 %v142
    %v182 = vunpack.c.l.b16 %v143
    %v183 = vunpack.c.l.b16 %v144
    %v184 = vunpack.c.l.b16 %v145
    %v185 = vunpack.c.l.b16 %v146
    %v186 = vunpack.c.l.b16 %v147
    %v187 = vpack.c.b16 %v172, %v171
    %v188 = vpack.c.b16 %v174, %v173
    %v189 = vpack.c.b16 %v176, %v175
    %v190 = vpack.c.b16 %v178, %v177
    %v191 = vpack.c.b16 %v180, %v179
    %v192 = vpack.c.b16 %v182, %v181
    %v193 = vpack.c.b16 %v184, %v183
    %v194 = vpack.c.b16 %v186, %v185
    %203 = vmatprep.subr.bf16.mxu0 0
    %204 = vmatpush1.bf16.msra.mxu0 %v194
    %205 = vmatprep.subr.bf16.mxu0 0
    %206 = vmatpush1.bf16.msra.mxu0 %v193
    %207 = vmatprep.subr.bf16.mxu0 0
    %208 = vmatpush1.bf16.msra.mxu0 %v192
    %209 = vmatprep.subr.bf16.mxu0 0
    %210 = vmatpush1.bf16.msra.mxu0 %v191
    %211 = vmatprep.subr.bf16.mxu0 0
    %212 = vmatpush1.bf16.msra.mxu0 %v190
    %213 = vmatprep.subr.bf16.mxu0 0
    %214 = vmatpush1.bf16.msra.mxu0 %v189
    %215 = vmatprep.subr.bf16.mxu0 0
    %216 = vmatpush1.bf16.msra.mxu0 %v188
    %217 = vmatprep.subr.bf16.mxu0 0
    %218 = vmatpush1.bf16.msra.mxu0 %v187
    %219 = vmatprep.subr.bf16.mxu0 0
    %220 = vmatpush2.bf16.msra.mxu0 0
    %221 = vmatprep.subr.bf16.mxu0 0
    %222 = vmatpush2.bf16.msra.mxu0 0
    %223 = vmatprep.subr.bf16.mxu0 0
    %224 = vmatpush2.bf16.msra.mxu0 0
    %225 = vmatprep.subr.bf16.mxu0 0
    %226 = vmatpush2.bf16.msra.mxu0 0
    %227 = vmatprep.subr.bf16.mxu0 0
    %228 = vmatpush2.bf16.msra.mxu0 0
    %229 = vmatprep.subr.bf16.mxu0 0
    %230 = vmatpush2.bf16.msra.mxu0 0
    %231 = vmatprep.subr.bf16.mxu0 0
    %232 = vmatpush2.bf16.msra.mxu0 0
    %233 = vmatprep.subr.bf16.mxu0 0
    %234 = vmatpush2.bf16.msra.mxu0 0
    %235 = vmatprep.mubr.bf16.mxu0 0
    %236 = vmatmul.mubr.bf16.gmra.mxu0 %v131
    %v237 = vpop.f32.mrf.mxu0
    %v238 = vadd.f32 %v153, %v237
    %v239 = vpop.f32.mrf.mxu0
    %v240 = vpop.f32.mrf.mxu0
    %v241 = vpop.f32.mrf.mxu0
    %242 = vdwg.mxu0
    %243 = vst [vmem:[#allocation8] sm:$0x3] %v238
    // Predicated region
    $region34: #{classifier_forward.1} parent=1 // pred_check
      _
    $region35: #{classifier_forward.1} parent=1 // pred_check_branch
      %245 = sbr.rel (0) target = $region37
    $region36: #{classifier_forward.1} parent=1 // pred_region
      %s247 = ssub.s32 32, 32
      %248 = vsyncadd [#allocation4], %s247
      %s250 = sshll.u32 [#allocation8], 4
      %s251 = int_to_ptr.vmem [resolvable:$true] %s250
      %253 = dma.vmem_to_hbm [thread:$0]  %s251, 32, %s5, [#allocation4]
    $region37: #{classifier_forward.1} parent=1 // pred_fallthru
      _
    // Predicated region
    $region38: #{classifier_forward.1} parent=1 // pred_check
      _
    $region39: #{classifier_forward.1} parent=1 // pred_check_branch
      %255 = sbr.rel (0) target = $region41
    $region40: #{classifier_forward.1} parent=1 // pred_region
      %256 = dma.done [#allocation4], 32
    $region41: #{classifier_forward.1} parent=1 // pred_fallthru
      _
    %257 = vsyncpa [#allocation3], 1
    %258 = vsyncpa [#allocation6], 1
    %259 = vsyncpa [#allocation4], 1

</llo_original>
